<compile_context>
chip_gen: v5e
topology: v5e:2x2
jax: 0.10.0
libtpu: 0.0.40
codegen_flags: <defaults>
</compile_context>

<pallas_src>
import numpy as np

import jax
import jax.numpy as jnp
from jax.experimental import pallas as pl
from jax.experimental.pallas import tpu as pltpu


NUM_CLASSES = 10
C_PAD = 128                       # class dim padded to one full lane tile
NEG_BIG = -1e30                   # finite "-inf" for padded class logits
_W_RESIDENT_BUDGET = 12 * 1024 * 1024   # max bf16 bytes of VMEM-resident weight


def _round_up(x, m):
    return (x + m - 1) // m * m


def _make_kernel(tk, w_resident, nk):
    """Build the kernel body; grid = (batch tiles, K tiles), K innermost."""

    def kernel(x_ref, w_ref, b_ref, y_ref, out_ref, acc_ref):
        k = pl.program_id(1)

        @pl.when(k == 0)
        def _():
            acc_ref[...] = jnp.zeros_like(acc_ref)

        # x streams in native f32; cast the tile to bf16 just before the MXU
        # (f32 accumulation via preferred_element_type).
        x_bf16 = x_ref[...].astype(jnp.bfloat16)

        if w_resident and nk > 1:
            # Full weight is VMEM-resident; take the k-th K-slab.
            start = pl.multiple_of(k * tk, tk)
            w_tile = w_ref[pl.ds(start, tk), :]
        else:
            w_tile = w_ref[...]

        acc_ref[...] += jnp.dot(x_bf16, w_tile, preferred_element_type=jnp.float32)

        @pl.when(k == pl.num_programs(1) - 1)
        def _():
            logits = acc_ref[...] + b_ref[...]              # (TM, 128) f32
            # Padded class lanes carry bias = NEG_BIG -> exp underflows to 0
            # and the label mask (y < NUM_CLASSES) never selects them.
            m = jnp.max(logits, axis=-1, keepdims=True)
            lse = m + jnp.log(jnp.sum(jnp.exp(logits - m), axis=-1, keepdims=True))
            classes = jax.lax.broadcasted_iota(jnp.int32, logits.shape, 1)
            label_mask = (classes == y_ref[...]).astype(jnp.float32)
            label_logit = jnp.sum(logits * label_mask, axis=-1, keepdims=True)
            per_example = lse - label_logit                 # (TM, 1)
            out_ref[...] = jnp.broadcast_to(per_example, out_ref.shape)

    return kernel


def clean_wrapper_forward(x_nchw, y, w, b, *, tm=512, tk=2048):
    """Training-mode forward of CleanWrapper: mean cross-entropy of core_model(x)."""
    B = x_nchw.shape[0]
    D = int(np.prod(x_nchw.shape[1:]))
    xb = jnp.dtype(x_nchw.dtype).itemsize

    # --- Tile selection -----------------------------------------------------
    # K tile: multiple of 128 lanes, clamped to the (padded) feature dim.
    tk = _round_up(min(tk, _round_up(D, 128)), 128)
    # Batch tile: multiple of 8 sublanes (x stays f32); cap at ceil(B/2) so
    # nb >= 2 once the batch is large enough (megacore split on v7x).
    tm = _round_up(min(tm, max(8, _round_up((B + 1) // 2, 8))), 8)

    B_pad = _round_up(B, tm)
    D_pad = _round_up(D, tk)
    nb = B_pad // tm
    nk = D_pad // tk

    # Keep the full padded bf16 weight VMEM-resident when it is small enough
    # (fetched once for the whole grid instead of once per batch tile).
    w_pad_bytes = D_pad * C_PAD * 2
    w_resident = w_pad_bytes <= _W_RESIDENT_BUDGET

    # --- Host-side glue (no dtype-cast pass over x) ---------------------------
    x_flat = x_nchw.reshape(B, D)                 # metadata-only reshape
    if (B_pad, D_pad) != (B, D):
        x_flat = jnp.pad(x_flat, ((0, B_pad - B), (0, D_pad - D)))

    # Weight padded to lane-dense 128 classes (zero pad); bias pad = NEG_BIG.
    w_p = jnp.zeros((D_pad, C_PAD), jnp.bfloat16)
    w_p = w_p.at[:D, :NUM_CLASSES].set(w.astype(jnp.bfloat16))
    b_p = jnp.full((1, C_PAD), NEG_BIG, jnp.float32)
    b_p = b_p.at[0, :NUM_CLASSES].set(b.astype(jnp.float32))

    # Labels as an int32 column (no one-hot stream).
    y_p = jnp.zeros((B_pad, 1), jnp.int32).at[:B, 0].set(y.astype(jnp.int32))

    # --- BlockSpecs -----------------------------------------------------------
    if w_resident:
        w_spec = pl.BlockSpec((D_pad, C_PAD), lambda i, k: (0, 0))
    else:
        w_spec = pl.BlockSpec((tk, C_PAD), lambda i, k: (k, 0))

    # --- VMEM budget (double-buffered inputs/outputs + accumulator) ----------
    vmem_est = (
        2 * tm * tk * xb                                   # x tile
        + 2 * (D_pad if w_resident else tk) * C_PAD * 2    # w
        + 2 * tm * 128 * 4                                 # out tile
        + 2 * tm * 128 * 4                                 # labels (lane padded)
        + 2 * 8 * 128 * 4                                  # bias
        + tm * C_PAD * 4                                   # accumulator scratch
    )
    # Above v5e's 16 MiB scoped default, below v7x's 64 MiB physical VMEM.
    vmem_limit = min(max(int(vmem_est * 3 // 2), 32 * 1024 * 1024),
                     56 * 1024 * 1024)

    per_example = pl.pallas_call(
        _make_kernel(tk, w_resident, nk),
        out_shape=jax.ShapeDtypeStruct((B_pad, 128), jnp.float32),
        grid=(nb, nk),
        in_specs=[
            pl.BlockSpec((tm, tk), lambda i, k: (i, k)),      # x tile (f32)
            w_spec,                                           # weight
            pl.BlockSpec((1, C_PAD), lambda i, k: (0, 0)),    # bias
            pl.BlockSpec((tm, 1), lambda i, k: (i, 0)),       # labels
        ],
        out_specs=pl.BlockSpec((tm, 128), lambda i, k: (i, 0)),
        scratch_shapes=[pltpu.VMEM((tm, C_PAD), jnp.float32)],
        compiler_params=pltpu.CompilerParams(
            dimension_semantics=("parallel", "arbitrary"),
            vmem_limit_bytes=vmem_limit,
        ),
        cost_estimate=pl.CostEstimate(
            flops=2 * B_pad * D_pad * C_PAD,
            transcendentals=B_pad * (C_PAD + 1),
            bytes_accessed=(B_pad * D_pad * xb
                            + (1 if w_resident else nb) * D_pad * C_PAD * 2
                            + B_pad * 128 * 4
                            + B_pad * 4),
        ),
    )(x_flat, w_p, b_p, y_p)

    # Finish the mean over the TRUE batch size outside the kernel (keeps the
    # batch grid axis parallel for megacore; padded rows are simply dropped).
    return jnp.sum(per_example[:B, 0]) / B


def _reference_forward(x_nchw, y, w, b, compute_dtype=jnp.float32):
    B = x_nchw.shape[0]
    x_flat = x_nchw.reshape(B, -1).astype(compute_dtype)
    logits = jnp.dot(x_flat, w.astype(compute_dtype),
                     preferred_element_type=jnp.float32) + b.astype(jnp.float32)
    logp = jax.nn.log_softmax(logits, axis=-1)
    return -jnp.mean(logp[jnp.arange(B), y])


if __name__ == "__main__":
    key = jax.random.PRNGKey(0)
    kx, ky, kw, kb = jax.random.split(key, 4)

    # Small shapes consistent with an image classifier wrapper.
    B, C, H, W = 2, 4, 16, 16
    D = C * H * W

    x = jax.random.normal(kx, (B, C, H, W), dtype=jnp.float32)       # NCHW, like PyTorch
    y = jax.random.randint(ky, (B,), 0, NUM_CLASSES, dtype=jnp.int32)

    # Deterministic synthetic core_model parameters (linear classifier).
    w = jax.random.normal(kw, (D, NUM_CLASSES), dtype=jnp.float32) * 0.02
    b = jax.random.normal(kb, (NUM_CLASSES,), dtype=jnp.float32) * 0.02

    loss = jax.block_until_ready(clean_wrapper_forward(x, y, w, b))

    # Check against a reference with matching bf16 operands (tight) and against
    # the exact f32 semantics (loose, bf16 rounding of inputs).
    ref_bf16 = jax.block_until_ready(
        _reference_forward(x, y, w, b, compute_dtype=jnp.bfloat16))
    ref_f32 = jax.block_until_ready(_reference_forward(x, y, w, b))
    assert jnp.allclose(loss, ref_bf16, rtol=1e-3, atol=1e-3), (loss, ref_bf16)
    assert jnp.allclose(loss, ref_f32, rtol=5e-2, atol=5e-2), (loss, ref_f32)

    # TODO(synk): eval_wf branch requires an external adversarial attacker
    # (eval_attacker) which has no self-contained Pallas equivalent; only the
    # training-mode forward (clean cross-entropy) is implemented here.

    print("KERNEL_OK")
</pallas_src>

<mosaic_0001>
module attributes {stable_mosaic.version = 11 : i64} {
  func.func @kernel(%arg0: i32, %arg1: i32, %arg2: memref<8x1024xf32, #tpu.memory_space<vmem>>, %arg3: memref<1024x128xbf16, #tpu.memory_space<vmem>>, %arg4: memref<1x128xf32, #tpu.memory_space<vmem>>, %arg5: memref<8x1xi32, #tpu.memory_space<vmem>>, %arg6: memref<8x128xf32, #tpu.memory_space<vmem>>, %arg7: memref<8x128xf32, #tpu.memory_space<vmem>>) attributes {dimension_semantics = [#tpu.dimension_semantics<parallel>, #tpu.dimension_semantics<arbitrary>], iteration_bounds = array<i64: 1, 1>, scalar_prefetch = 0 : i64, scratch_operands = 1 : i64, tpu.core_type = #tpu.core_type<tc>, window_params = [{transform_indices = @transform_0, window_bounds = array<i64: 8, 1024>}, {pipeline_mode = #tpu.pipeline_mode<synchronous>, transform_indices = @transform_1, window_bounds = array<i64: 1024, 128>}, {pipeline_mode = #tpu.pipeline_mode<synchronous>, transform_indices = @transform_2, window_bounds = array<i64: 1, 128>}, {transform_indices = @transform_3, window_bounds = array<i64: 8, 1>}, {transform_indices = @transform_4, window_bounds = array<i64: 8, 128>}]} {
    %c0_i32 = arith.constant 0 : i32
    %0 = arith.cmpi eq, %arg1, %c0_i32 : i32
    %1 = arith.extui %0 : i1 to i32
    %c0_i32_0 = arith.constant 0 : i32
    %2 = arith.cmpi ne, %1, %c0_i32_0 : i32
    scf.if %2 {
      %cst_10 = arith.constant 0.000000e+00 : f32
      %13 = vector.broadcast %cst_10 : f32 to vector<8x128xf32>
      %c0_11 = arith.constant 0 : index
      %c0_12 = arith.constant 0 : index
      %14 = vector.load %arg7[%c0_11, %c0_12] : memref<8x128xf32, #tpu.memory_space<vmem>>, vector<8x128xf32>
      tpu.vector_store %arg7[%c0_11, %c0_12], %13 {strides = array<i32>} : memref<8x128xf32, #tpu.memory_space<vmem>>, vector<8x128xf32>,
    } else {
    }
    %c0 = arith.constant 0 : index
    %c0_1 = arith.constant 0 : index
    %3 = vector.load %arg2[%c0, %c0_1] : memref<8x1024xf32, #tpu.memory_space<vmem>>, vector<8x1024xf32>
    %4 = arith.truncf %3 : vector<8x1024xf32> to vector<8x1024xbf16>
    %c0_2 = arith.constant 0 : index
    %c0_3 = arith.constant 0 : index
    %5 = vector.load %arg3[%c0_2, %c0_3] : memref<1024x128xbf16, #tpu.memory_space<vmem>>, vector<1024x128xbf16>
    %c0_4 = arith.constant 0 : index
    %c0_5 = arith.constant 0 : index
    %6 = vector.load %arg7[%c0_4, %c0_5] : memref<8x128xf32, #tpu.memory_space<vmem>>, vector<8x128xf32>
    %cst = arith.constant dense<0.000000e+00> : vector<8x128xf32>
    %7 = tpu.matmul %4, %5, %cst {dimension_numbers = #tpu.dot_dimension_numbers<[1], [0], [0], [1], [0, 0, 1, 1], [], []>} : vector<8x1024xbf16>, vector<1024x128xbf16>, vector<8x128xf32> -> vector<8x128xf32>
    %8 = arith.addf %6, %7 : vector<8x128xf32>
    %c0_6 = arith.constant 0 : index
    %c0_7 = arith.constant 0 : index
    %9 = vector.load %arg7[%c0_6, %c0_7] : memref<8x128xf32, #tpu.memory_space<vmem>>, vector<8x128xf32>
    tpu.vector_store %arg7[%c0_6, %c0_7], %8 {strides = array<i32>} : memref<8x128xf32, #tpu.memory_space<vmem>>, vector<8x128xf32>,
    %c0_i32_8 = arith.constant 0 : i32
    %10 = arith.cmpi eq, %arg1, %c0_i32_8 : i32
    %11 = arith.extui %10 : i1 to i32
    %c0_i32_9 = arith.constant 0 : i32
    %12 = arith.cmpi ne, %11, %c0_i32_9 : i32
    scf.if %12 {
      %c0_10 = arith.constant 0 : index
      %c0_11 = arith.constant 0 : index
      %13 = vector.load %arg7[%c0_10, %c0_11] : memref<8x128xf32, #tpu.memory_space<vmem>>, vector<8x128xf32>
      %c0_12 = arith.constant 0 : index
      %c0_13 = arith.constant 0 : index
      %14 = vector.load %arg4[%c0_12, %c0_13] : memref<1x128xf32, #tpu.memory_space<vmem>>, vector<1x128xf32>
      %15 = vector.broadcast %14 : vector<1x128xf32> to vector<8x128xf32>
      %16 = arith.addf %13, %15 : vector<8x128xf32>
      %cst_14 = arith.constant dense<0xFF800000> : vector<8xf32>
      %17 = vector.multi_reduction <maximumf>, %16, %cst_14 [1] : vector<8x128xf32> to vector<8xf32>
      %18 = vector.shape_cast %17 : vector<8xf32> to vector<8x1xf32>
      %19 = vector.broadcast %18 : vector<8x1xf32> to vector<8x128xf32>
      %20 = arith.subf %16, %19 : vector<8x128xf32>
      %21 = math.exp %20 : vector<8x128xf32>
      %cst_15 = arith.constant dense<0.000000e+00> : vector<8xf32>
      %22 = vector.multi_reduction <add>, %21, %cst_15 [1] : vector<8x128xf32> to vector<8xf32>
      %23 = vector.shape_cast %22 : vector<8xf32> to vector<8x1xf32>
      %24 = math.log %23 : vector<8x1xf32>
      %25 = arith.addf %18, %24 : vector<8x1xf32>
      %26 = tpu.iota {dimensions = array<i32: 1>} : vector<8x128xi32>
      %c0_16 = arith.constant 0 : index
      %c0_17 = arith.constant 0 : index
      %27 = vector.load %arg5[%c0_16, %c0_17] : memref<8x1xi32, #tpu.memory_space<vmem>>, vector<8x1xi32>
      %28 = vector.broadcast %27 : vector<8x1xi32> to vector<8x128xi32>
      %29 = arith.cmpi eq, %26, %28 : vector<8x128xi32>
      %30 = arith.extui %29 : vector<8x128xi1> to vector<8x128xi32>
      %31 = arith.sitofp %30 : vector<8x128xi32> to vector<8x128xf32>
      %32 = arith.mulf %16, %31 : vector<8x128xf32>
      %cst_18 = arith.constant dense<0.000000e+00> : vector<8xf32>
      %33 = vector.multi_reduction <add>, %32, %cst_18 [1] : vector<8x128xf32> to vector<8xf32>
      %34 = vector.shape_cast %33 : vector<8xf32> to vector<8x1xf32>
      %35 = arith.subf %25, %34 : vector<8x1xf32>
      %36 = vector.shape_cast %35 : vector<8x1xf32> to vector<8x1xf32>
      %37 = vector.broadcast %36 : vector<8x1xf32> to vector<8x128xf32>
      %c0_19 = arith.constant 0 : index
      %c0_20 = arith.constant 0 : index
      %38 = vector.load %arg6[%c0_19, %c0_20] : memref<8x128xf32, #tpu.memory_space<vmem>>, vector<8x128xf32>
      tpu.vector_store %arg6[%c0_19, %c0_20], %37 {strides = array<i32>} : memref<8x128xf32, #tpu.memory_space<vmem>>, vector<8x128xf32>,
    } else {
    }
    return
  }
  func.func @transform_0(%arg0: i32, %arg1: i32) -> (i32, i32) {
    %c0_i32 = arith.constant 0 : i32
    return %arg0, %arg1 : i32, i32
  }
  func.func @transform_1(%arg0: i32, %arg1: i32) -> (i32, i32) {
    %c0_i32 = arith.constant 0 : i32
    %c0_i32_0 = arith.constant 0 : i32
    %c0_i32_1 = arith.constant 0 : i32
    return %c0_i32, %c0_i32_0 : i32, i32
  }
  func.func @transform_2(%arg0: i32, %arg1: i32) -> (i32, i32) {
    %c0_i32 = arith.constant 0 : i32
    %c0_i32_0 = arith.constant 0 : i32
    %c0_i32_1 = arith.constant 0 : i32
    return %c0_i32, %c0_i32_0 : i32, i32
  }
  func.func @transform_3(%arg0: i32, %arg1: i32) -> (i32, i32) {
    %c0_i32 = arith.constant 0 : i32
    %c0_i32_0 = arith.constant 0 : i32
    return %arg0, %c0_i32 : i32, i32
  }
  func.func @transform_4(%arg0: i32, %arg1: i32) -> (i32, i32) {
    %c0_i32 = arith.constant 0 : i32
    %c0_i32_0 = arith.constant 0 : i32
    return %arg0, %c0_i32 : i32, i32
  }
}

</mosaic_0001>

<llo_original>
// kernel: tpu_custom_call.1
$region0: #{tpu_custom_call.1}
  #allocation0 [shape = 'u32[]', space=smem, size = 0x4, offset = 0x4, fixed_abs, tag = 'smem constant byte address 0x4 - core index']
  #allocation1 [shape = 'u32[72,128]{1,0:T(1,128)}', space=vmem, size = 0x9000, scoped, tag = 'internal scratch']
  #allocation2 [shape = 'f32[8,128]{1,0:T(8,128)}', space=vmem, size = 0x1000, scoped, tag = 'scratch operand']
  %s0 = inlined_call_operand.hbm [shape: f32[8,1024], index: 0, kind: input, shape index: {}]
  %s1 = inlined_call_operand.hbm [shape: bf16[1024,128], index: 1, kind: input, shape index: {}]
  %s2 = inlined_call_operand.vmem [shape: f32[1,128], index: 2, kind: input, shape index: {}]
  %s3 = inlined_call_operand.vmem [shape: s32[8,1], index: 3, kind: input, shape index: {}]
  %s4 = inlined_call_operand.hbm [shape: f32[8,128], index: 4, kind: output, shape index: {}]
  %s5 = sld [smem:[#allocation0]]
  $region42: #{tpu_custom_call.1} parent=0
    _
  %s7 = ssub.s32 1, %s5
  %s8 = scalar_select 0, %s7, %s5
  $region1: #{tpu_custom_call.1} parent=0
    #allocation3 [shape = 'u8[32768]{0}', space=vmem, size = 0x8000, scoped, tag = 'input window, operand 0, single buffered']
    #allocation4 [shape = 's32[1]{0}', space=sflag, size = 0x4, scoped, tag = 'scoped memory for tpu_custom_call.1']
    #allocation5 [shape = 's32[1]{0}', space=sflag, size = 0x4, scoped, tag = 'scoped memory for tpu_custom_call.1']
    #allocation6 [shape = 'u8[262144]{0}', space=vmem, size = 0x40000, scoped, tag = 'input window, operand 1, single buffered']
    #allocation7 [shape = 's32[1]{0}', space=sflag, size = 0x4, scoped, tag = 'scoped memory for tpu_custom_call.1']
    #allocation8 [shape = 'u8[4096]{0}', space=vmem, size = 0x1000, scoped, tag = 'output window, operand 0, single buffered']
    %9 = vsyncpa [#allocation4], 0
    %10 = vsyncpa [#allocation7], 0
    %11 = vsyncpa [#allocation5], 0
    // Predicated region
    $region2: #{tpu_custom_call.1} parent=1 // pred_check
      _
    $region3: #{tpu_custom_call.1} parent=1 // pred_check_branch
      %13 = sbr.rel (0) target = $region5
    $region4: #{tpu_custom_call.1} parent=1 // pred_region
      %15 = vsyncadd [#allocation4], 0
      %s17 = sshll.u32 %s0, 4
      %s18 = int_to_ptr.hbm [resolvable:$true] %s17
      %s19 = sshll.u32 [#allocation3], 4
      %s20 = int_to_ptr.vmem [resolvable:$true] %s19
      %22 = dma.hbm_to_vmem [thread:$0]  %s18, 1024, %s20, [#allocation4]
    $region5: #{tpu_custom_call.1} parent=1 // pred_fallthru
      _
    // Predicated region
    $region6: #{tpu_custom_call.1} parent=1 // pred_check
      _
    $region7: #{tpu_custom_call.1} parent=1 // pred_check_branch
      %24 = sbr.rel (0) target = $region9
    $region8: #{tpu_custom_call.1} parent=1 // pred_region
      %26 = vsyncadd [#allocation7], 0
      %s27 = sshll.u32 %s1, 4
      %s28 = int_to_ptr.hbm [resolvable:$true] %s27
      %s29 = sshll.u32 [#allocation6], 4
      %s30 = int_to_ptr.vmem [resolvable:$true] %s29
      %35 = dma.hbm_to_vmem [thread:$0]  %s28, 8192, %s30, [#allocation7], 64, 64, 4
    $region9: #{tpu_custom_call.1} parent=1 // pred_fallthru
      _
    // Predicated region
    $region10: #{tpu_custom_call.1} parent=1 // pred_check
      _
    $region11: #{tpu_custom_call.1} parent=1 // pred_check_branch
      %37 = sbr.rel (0) target = $region13
    $region12: #{tpu_custom_call.1} parent=1 // pred_region
      _
    $region13: #{tpu_custom_call.1} parent=1 // pred_fallthru
      _
    // Predicated region
    $region14: #{tpu_custom_call.1} parent=1 // pred_check
      _
    $region15: #{tpu_custom_call.1} parent=1 // pred_check_branch
      %39 = sbr.rel (0) target = $region17
    $region16: #{tpu_custom_call.1} parent=1 // pred_region
      _
    $region17: #{tpu_custom_call.1} parent=1 // pred_fallthru
      _
    // Predicated region
    $region18: #{tpu_custom_call.1} parent=1 // pred_check
      _
    $region19: #{tpu_custom_call.1} parent=1 // pred_check_branch
      %41 = sbr.rel (0) target = $region21
    $region20: #{tpu_custom_call.1} parent=1 // pred_region
      %43 = dma.done [#allocation4], 1024
    $region21: #{tpu_custom_call.1} parent=1 // pred_fallthru
      _
    // Predicated region
    $region22: #{tpu_custom_call.1} parent=1 // pred_check
      _
    $region23: #{tpu_custom_call.1} parent=1 // pred_check_branch
      %45 = sbr.rel (0) target = $region25
    $region24: #{tpu_custom_call.1} parent=1 // pred_region
      %47 = dma.done [#allocation7], 8192
    $region25: #{tpu_custom_call.1} parent=1 // pred_fallthru
      _
    %p48 = scmp.eq.s32.totalorder 0, 0
    // Predicated region
    $region26: #{tpu_custom_call.1} parent=1 // pred_check
      %p49 = pneg %p48
    $region27: #{tpu_custom_call.1} parent=1 // pred_check_branch
      %51 = sbr.rel (%p49) target = $region29
    $region28: #{tpu_custom_call.1} parent=1 // pred_region
      %52 = vst [vmem:[#allocation2] sm:$0xff] 0.0
    $region29: #{tpu_custom_call.1} parent=1 // pred_fallthru
      _
    %v53 = vld [vmem:[#allocation3] sm:$0xff]
    %v54 = vld [vmem:[#allocation3 + $0x8] sm:$0xff]
    %v55 = vld [vmem:[#allocation3 + $0x10] sm:$0xff]
    %v56 = vld [vmem:[#allocation3 + $0x18] sm:$0xff]
    %v57 = vld [vmem:[#allocation3 + $0x20] sm:$0xff]
    %v58 = vld [vmem:[#allocation3 + $0x28] sm:$0xff]
    %v59 = vld [vmem:[#allocation3 + $0x30] sm:$0xff]
    %v60 = vld [vmem:[#allocation3 + $0x38] sm:$0xff]
    %v61 = vpack.c.bf16 %v53, %v53
    %v62 = vpack.c.bf16 %v54, %v54
    %v63 = vpack.c.bf16 %v55, %v55
    %v64 = vpack.c.bf16 %v56, %v56
    %v65 = vpack.c.bf16 %v57, %v57
    %v66 = vpack.c.bf16 %v58, %v58
    %v67 = vpack.c.bf16 %v59, %v59
    %v68 = vpack.c.bf16 %v60, %v60
    %v69 = vld [vmem:[#allocation6] sm:$0xf]
    %v70 = vld [vmem:[#allocation6 + $0x4] sm:$0xf]
    %v71 = vld [vmem:[#allocation6 + $0x8] sm:$0xf]
    %v72 = vld [vmem:[#allocation6 + $0xc] sm:$0xf]
    %v73 = vld [vmem:[#allocation6 + $0x10] sm:$0xf]
    %v74 = vld [vmem:[#allocation6 + $0x14] sm:$0xf]
    %v75 = vld [vmem:[#allocation6 + $0x18] sm:$0xf]
    %v76 = vld [vmem:[#allocation6 + $0x1c] sm:$0xf]
    %v77 = vld [vmem:[#allocation6 + $0x20] sm:$0xf]
    %v78 = vld [vmem:[#allocation6 + $0x24] sm:$0xf]
    %v79 = vld [vmem:[#allocation6 + $0x28] sm:$0xf]
    %v80 = vld [vmem:[#allocation6 + $0x2c] sm:$0xf]
    %v81 = vld [vmem:[#allocation6 + $0x30] sm:$0xf]
    %v82 = vld [vmem:[#allocation6 + $0x34] sm:$0xf]
    %v83 = vld [vmem:[#allocation6 + $0x38] sm:$0xf]
    %v84 = vld [vmem:[#allocation6 + $0x3c] sm:$0xf]
    %v85 = vld [vmem:[#allocation6 + $0x40] sm:$0xf]
    %v86 = vld [vmem:[#allocation6 + $0x44] sm:$0xf]
    %v87 = vld [vmem:[#allocation6 + $0x48] sm:$0xf]
    %v88 = vld [vmem:[#allocation6 + $0x4c] sm:$0xf]
    %v89 = vld [vmem:[#allocation6 + $0x50] sm:$0xf]
    %v90 = vld [vmem:[#allocation6 + $0x54] sm:$0xf]
    %v91 = vld [vmem:[#allocation6 + $0x58] sm:$0xf]
    %v92 = vld [vmem:[#allocation6 + $0x5c] sm:$0xf]
    %v93 = vld [vmem:[#allocation6 + $0x60] sm:$0xf]
    %v94 = vld [vmem:[#allocation6 + $0x64] sm:$0xf]
    %v95 = vld [vmem:[#allocation6 + $0x68] sm:$0xf]
    %v96 = vld [vmem:[#allocation6 + $0x6c] sm:$0xf]
    %v97 = vld [vmem:[#allocation6 + $0x70] sm:$0xf]
    %v98 = vld [vmem:[#allocation6 + $0x74] sm:$0xf]
    %v99 = vld [vmem:[#allocation6 + $0x78] sm:$0xf]
    %v100 = vld [vmem:[#allocation6 + $0x7c] sm:$0xf]
    %v101 = vld [vmem:[#allocation6 + $0x80] sm:$0xf]
    %v102 = vld [vmem:[#allocation6 + $0x84] sm:$0xf]
    %v103 = vld [vmem:[#allocation6 + $0x88] sm:$0xf]
    %v104 = vld [vmem:[#allocation6 + $0x8c] sm:$0xf]
    %v105 = vld [vmem:[#allocation6 + $0x90] sm:$0xf]
    %v106 = vld [vmem:[#allocation6 + $0x94] sm:$0xf]
    %v107 = vld [vmem:[#allocation6 + $0x98] sm:$0xf]
    %v108 = vld [vmem:[#allocation6 + $0x9c] sm:$0xf]
    %v109 = vld [vmem:[#allocation6 + $0xa0] sm:$0xf]
    %v110 = vld [vmem:[#allocation6 + $0xa4] sm:$0xf]
    %v111 = vld [vmem:[#allocation6 + $0xa8] sm:$0xf]
    %v112 = vld [vmem:[#allocation6 + $0xac] sm:$0xf]
    %v113 = vld [vmem:[#allocation6 + $0xb0] sm:$0xf]
    %v114 = vld [vmem:[#allocation6 + $0xb4] sm:$0xf]
    %v115 = vld [vmem:[#allocation6 + $0xb8] sm:$0xf]
    %v116 = vld [vmem:[#allocation6 + $0xbc] sm:$0xf]
    %v117 = vld [vmem:[#allocation6 + $0xc0] sm:$0xf]
    %v118 = vld [vmem:[#allocation6 + $0xc4] sm:$0xf]
    %v119 = vld [vmem:[#allocation6 + $0xc8] sm:$0xf]
    %v120 = vld [vmem:[#allocation6 + $0xcc] sm:$0xf]
    %v121 = vld [vmem:[#allocation6 + $0xd0] sm:$0xf]
    %v122 = vld [vmem:[#allocation6 + $0xd4] sm:$0xf]
    %v123 = vld [vmem:[#allocation6 + $0xd8] sm:$0xf]
    %v124 = vld [vmem:[#allocation6 + $0xdc] sm:$0xf]
    %v125 = vld [vmem:[#allocation6 + $0xe0] sm:$0xf]
    %v126 = vld [vmem:[#allocation6 + $0xe4] sm:$0xf]
    %v127 = vld [vmem:[#allocation6 + $0xe8] sm:$0xf]
    %v128 = vld [vmem:[#allocation6 + $0xec] sm:$0xf]
    %v129 = vld [vmem:[#allocation6 + $0xf0] sm:$0xf]
    %v130 = vld [vmem:[#allocation6 + $0xf4] sm:$0xf]
    %v131 = vld [vmem:[#allocation6 + $0xf8] sm:$0xf]
    %v132 = vld [vmem:[#allocation6 + $0xfc] sm:$0xf]
    %v133 = vld [vmem:[#allocation6 + $0x100] sm:$0xf]
    %v134 = vld [vmem:[#allocation6 + $0x104] sm:$0xf]
    %v135 = vld [vmem:[#allocation6 + $0x108] sm:$0xf]
    %v136 = vld [vmem:[#allocation6 + $0x10c] sm:$0xf]
    %v137 = vld [vmem:[#allocation6 + $0x110] sm:$0xf]
    %v138 = vld [vmem:[#allocation6 + $0x114] sm:$0xf]
    %v139 = vld [vmem:[#allocation6 + $0x118] sm:$0xf]
    %v140 = vld [vmem:[#allocation6 + $0x11c] sm:$0xf]
    %v141 = vld [vmem:[#allocation6 + $0x120] sm:$0xf]
    %v142 = vld [vmem:[#allocation6 + $0x124] sm:$0xf]
    %v143 = vld [vmem:[#allocation6 + $0x128] sm:$0xf]
    %v144 = vld [vmem:[#allocation6 + $0x12c] sm:$0xf]
    %v145 = vld [vmem:[#allocation6 + $0x130] sm:$0xf]
    %v146 = vld [vmem:[#allocation6 + $0x134] sm:$0xf]
    %v147 = vld [vmem:[#allocation6 + $0x138] sm:$0xf]
    %v148 = vld [vmem:[#allocation6 + $0x13c] sm:$0xf]
    %v149 = vld [vmem:[#allocation6 + $0x140] sm:$0xf]
    %v150 = vld [vmem:[#allocation6 + $0x144] sm:$0xf]
    %v151 = vld [vmem:[#allocation6 + $0x148] sm:$0xf]
    %v152 = vld [vmem:[#allocation6 + $0x14c] sm:$0xf]
    %v153 = vld [vmem:[#allocation6 + $0x150] sm:$0xf]
    %v154 = vld [vmem:[#allocation6 + $0x154] sm:$0xf]
    %v155 = vld [vmem:[#allocation6 + $0x158] sm:$0xf]
    %v156 = vld [vmem:[#allocation6 + $0x15c] sm:$0xf]
    %v157 = vld [vmem:[#allocation6 + $0x160] sm:$0xf]
    %v158 = vld [vmem:[#allocation6 + $0x164] sm:$0xf]
    %v159 = vld [vmem:[#allocation6 + $0x168] sm:$0xf]
    %v160 = vld [vmem:[#allocation6 + $0x16c] sm:$0xf]
    %v161 = vld [vmem:[#allocation6 + $0x170] sm:$0xf]
    %v162 = vld [vmem:[#allocation6 + $0x174] sm:$0xf]
    %v163 = vld [vmem:[#allocation6 + $0x178] sm:$0xf]
    %v164 = vld [vmem:[#allocation6 + $0x17c] sm:$0xf]
    %v165 = vld [vmem:[#allocation6 + $0x180] sm:$0xf]
    %v166 = vld [vmem:[#allocation6 + $0x184] sm:$0xf]
    %v167 = vld [vmem:[#allocation6 + $0x188] sm:$0xf]
    %v168 = vld [vmem:[#allocation6 + $0x18c] sm:$0xf]
    %v169 = vld [vmem:[#allocation6 + $0x190] sm:$0xf]
    %v170 = vld [vmem:[#allocation6 + $0x194] sm:$0xf]
    %v171 = vld [vmem:[#allocation6 + $0x198] sm:$0xf]
    %v172 = vld [vmem:[#allocation6 + $0x19c] sm:$0xf]
    %v173 = vld [vmem:[#allocation6 + $0x1a0] sm:$0xf]
    %v174 = vld [vmem:[#allocation6 + $0x1a4] sm:$0xf]
    %v175 = vld [vmem:[#allocation6 + $0x1a8] sm:$0xf]
    %v176 = vld [vmem:[#allocation6 + $0x1ac] sm:$0xf]
    %v177 = vld [vmem:[#allocation6 + $0x1b0] sm:$0xf]
    %v178 = vld [vmem:[#allocation6 + $0x1b4] sm:$0xf]
    %v179 = vld [vmem:[#allocation6 + $0x1b8] sm:$0xf]
    %v180 = vld [vmem:[#allocation6 + $0x1bc] sm:$0xf]
    %v181 = vld [vmem:[#allocation6 + $0x1c0] sm:$0xf]
    %v182 = vld [vmem:[#allocation6 + $0x1c4] sm:$0xf]
    %v183 = vld [vmem:[#allocation6 + $0x1c8] sm:$0xf]
    %v184 = vld [vmem:[#allocation6 + $0x1cc] sm:$0xf]
    %v185 = vld [vmem:[#allocation6 + $0x1d0] sm:$0xf]
    %v186 = vld [vmem:[#allocation6 + $0x1d4] sm:$0xf]
    %v187 = vld [vmem:[#allocation6 + $0x1d8] sm:$0xf]
    %v188 = vld [vmem:[#allocation6 + $0x1dc] sm:$0xf]
    %v189 = vld [vmem:[#allocation6 + $0x1e0] sm:$0xf]
    %v190 = vld [vmem:[#allocation6 + $0x1e4] sm:$0xf]
    %v191 = vld [vmem:[#allocation6 + $0x1e8] sm:$0xf]
    %v192 = vld [vmem:[#allocation6 + $0x1ec] sm:$0xf]
    %v193 = vld [vmem:[#allocation6 + $0x1f0] sm:$0xf]
    %v194 = vld [vmem:[#allocation6 + $0x1f4] sm:$0xf]
    %v195 = vld [vmem:[#allocation6 + $0x1f8] sm:$0xf]
    %v196 = vld [vmem:[#allocation6 + $0x1fc] sm:$0xf]
    %v197 = vld [vmem:[#allocation2] sm:$0xff]
    %v326 = vunpack.c.l.b16 %v69
    %v327 = vunpack.c.l.b16 %v70
    %v328 = vunpack.c.l.b16 %v71
    %v329 = vunpack.c.l.b16 %v72
    %v330 = vunpack.c.l.b16 %v73
    %v331 = vunpack.c.l.b16 %v74
    %v332 = vunpack.c.l.b16 %v75
    %v333 = vunpack.c.l.b16 %v76
    %v334 = vunpack.c.l.b16 %v77
    %v335 = vunpack.c.l.b16 %v78
    %v336 = vunpack.c.l.b16 %v79
    %v337 = vunpack.c.l.b16 %v80
    %v338 = vunpack.c.l.b16 %v81
    %v339 = vunpack.c.l.b16 %v82
    %v340 = vunpack.c.l.b16 %v83
    %v341 = vunpack.c.l.b16 %v84
    %v342 = vunpack.c.l.b16 %v85
    %v343 = vunpack.c.l.b16 %v86
    %v344 = vunpack.c.l.b16 %v87
    %v345 = vunpack.c.l.b16 %v88
    %v346 = vunpack.c.l.b16 %v89
    %v347 = vunpack.c.l.b16 %v90
    %v348 = vunpack.c.l.b16 %v91
    %v349 = vunpack.c.l.b16 %v92
    %v350 = vunpack.c.l.b16 %v93
    %v351 = vunpack.c.l.b16 %v94
    %v352 = vunpack.c.l.b16 %v95
    %v353 = vunpack.c.l.b16 %v96
    %v354 = vunpack.c.l.b16 %v97
    %v355 = vunpack.c.l.b16 %v98
    %v356 = vunpack.c.l.b16 %v99
    %v357 = vunpack.c.l.b16 %v100
    %v358 = vunpack.c.l.b16 %v101
    %v359 = vunpack.c.l.b16 %v102
    %v360 = vunpack.c.l.b16 %v103
    %v361 = vunpack.c.l.b16 %v104
    %v362 = vunpack.c.l.b16 %v105
    %v363 = vunpack.c.l.b16 %v106
    %v364 = vunpack.c.l.b16 %v107
    %v365 = vunpack.c.l.b16 %v108
    %v366 = vunpack.c.l.b16 %v109
    %v367 = vunpack.c.l.b16 %v110
    %v368 = vunpack.c.l.b16 %v111
    %v369 = vunpack.c.l.b16 %v112
    %v370 = vunpack.c.l.b16 %v113
    %v371 = vunpack.c.l.b16 %v114
    %v372 = vunpack.c.l.b16 %v115
    %v373 = vunpack.c.l.b16 %v116
    %v374 = vunpack.c.l.b16 %v117
    %v375 = vunpack.c.l.b16 %v118
    %v376 = vunpack.c.l.b16 %v119
    %v377 = vunpack.c.l.b16 %v120
    %v378 = vunpack.c.l.b16 %v121
    %v379 = vunpack.c.l.b16 %v122
    %v380 = vunpack.c.l.b16 %v123
    %v381 = vunpack.c.l.b16 %v124
    %v382 = vunpack.c.l.b16 %v125
    %v383 = vunpack.c.l.b16 %v126
    %v384 = vunpack.c.l.b16 %v127
    %v385 = vunpack.c.l.b16 %v128
    %v386 = vunpack.c.l.b16 %v129
    %v387 = vunpack.c.l.b16 %v130
    %v388 = vunpack.c.l.b16 %v131
    %v389 = vunpack.c.l.b16 %v132
    %v390 = vunpack.c.l.b16 %v133
    %v391 = vunpack.c.l.b16 %v134
    %v392 = vunpack.c.l.b16 %v135
    %v393 = vunpack.c.l.b16 %v136
    %v394 = vunpack.c.l.b16 %v137
    %v395 = vunpack.c.l.b16 %v138
    %v396 = vunpack.c.l.b16 %v139
    %v397 = vunpack.c.l.b16 %v140
    %v398 = vunpack.c.l.b16 %v141
    %v399 = vunpack.c.l.b16 %v142
    %v400 = vunpack.c.l.b16 %v143
    %v401 = vunpack.c.l.b16 %v144
    %v402 = vunpack.c.l.b16 %v145
    %v403 = vunpack.c.l.b16 %v146
    %v404 = vunpack.c.l.b16 %v147
    %v405 = vunpack.c.l.b16 %v148
    %v406 = vunpack.c.l.b16 %v149
    %v407 = vunpack.c.l.b16 %v150
    %v408 = vunpack.c.l.b16 %v151
    %v409 = vunpack.c.l.b16 %v152
    %v410 = vunpack.c.l.b16 %v153
    %v411 = vunpack.c.l.b16 %v154
    %v412 = vunpack.c.l.b16 %v155
    %v413 = vunpack.c.l.b16 %v156
    %v414 = vunpack.c.l.b16 %v157
    %v415 = vunpack.c.l.b16 %v158
    %v416 = vunpack.c.l.b16 %v159
    %v417 = vunpack.c.l.b16 %v160
    %v418 = vunpack.c.l.b16 %v161
    %v419 = vunpack.c.l.b16 %v162
    %v420 = vunpack.c.l.b16 %v163
    %v421 = vunpack.c.l.b16 %v164
    %v422 = vunpack.c.l.b16 %v165
    %v423 = vunpack.c.l.b16 %v166
    %v424 = vunpack.c.l.b16 %v167
    %v425 = vunpack.c.l.b16 %v168
    %v426 = vunpack.c.l.b16 %v169
    %v427 = vunpack.c.l.b16 %v170
    %v428 = vunpack.c.l.b16 %v171
    %v429 = vunpack.c.l.b16 %v172
    %v430 = vunpack.c.l.b16 %v173
    %v431 = vunpack.c.l.b16 %v174
    %v432 = vunpack.c.l.b16 %v175
    %v433 = vunpack.c.l.b16 %v176
    %v434 = vunpack.c.l.b16 %v177
    %v435 = vunpack.c.l.b16 %v178
    %v436 = vunpack.c.l.b16 %v179
    %v437 = vunpack.c.l.b16 %v180
    %v438 = vunpack.c.l.b16 %v181
    %v439 = vunpack.c.l.b16 %v182
    %v440 = vunpack.c.l.b16 %v183
    %v441 = vunpack.c.l.b16 %v184
    %v442 = vunpack.c.l.b16 %v185
    %v443 = vunpack.c.l.b16 %v186
    %v444 = vunpack.c.l.b16 %v187
    %v445 = vunpack.c.l.b16 %v188
    %v446 = vunpack.c.l.b16 %v189
    %v447 = vunpack.c.l.b16 %v190
    %v448 = vunpack.c.l.b16 %v191
    %v449 = vunpack.c.l.b16 %v192
    %v450 = vunpack.c.l.b16 %v193
    %v451 = vunpack.c.l.b16 %v194
    %v452 = vunpack.c.l.b16 %v195
    %v453 = vunpack.c.l.b16 %v196
    %v454 = vpack.c.b16 %v327, %v326
    %v455 = vpack.c.b16 %v329, %v328
    %v456 = vpack.c.b16 %v331, %v330
    %v457 = vpack.c.b16 %v333, %v332
    %v458 = vpack.c.b16 %v335, %v334
    %v459 = vpack.c.b16 %v337, %v336
    %v460 = vpack.c.b16 %v339, %v338
    %v461 = vpack.c.b16 %v341, %v340
    %v462 = vpack.c.b16 %v343, %v342
    %v463 = vpack.c.b16 %v345, %v344
    %v464 = vpack.c.b16 %v347, %v346
    %v465 = vpack.c.b16 %v349, %v348
    %v466 = vpack.c.b16 %v351, %v350
    %v467 = vpack.c.b16 %v353, %v352
    %v468 = vpack.c.b16 %v355, %v354
    %v469 = vpack.c.b16 %v357, %v356
    %v470 = vpack.c.b16 %v359, %v358
    %v471 = vpack.c.b16 %v361, %v360
    %v472 = vpack.c.b16 %v363, %v362
    %v473 = vpack.c.b16 %v365, %v364
    %v474 = vpack.c.b16 %v367, %v366
    %v475 = vpack.c.b16 %v369, %v368
    %v476 = vpack.c.b16 %v371, %v370
    %v477 = vpack.c.b16 %v373, %v372
    %v478 = vpack.c.b16 %v375, %v374
    %v479 = vpack.c.b16 %v377, %v376
    %v480 = vpack.c.b16 %v379, %v378
    %v481 = vpack.c.b16 %v381, %v380
    %v482 = vpack.c.b16 %v383, %v382
    %v483 = vpack.c.b16 %v385, %v384
    %v484 = vpack.c.b16 %v387, %v386
    %v485 = vpack.c.b16 %v389, %v388
    %v486 = vpack.c.b16 %v391, %v390
    %v487 = vpack.c.b16 %v393, %v392
    %v488 = vpack.c.b16 %v395, %v394
    %v489 = vpack.c.b16 %v397, %v396
    %v490 = vpack.c.b16 %v399, %v398
    %v491 = vpack.c.b16 %v401, %v400
    %v492 = vpack.c.b16 %v403, %v402
    %v493 = vpack.c.b16 %v405, %v404
    %v494 = vpack.c.b16 %v407, %v406
    %v495 = vpack.c.b16 %v409, %v408
    %v496 = vpack.c.b16 %v411, %v410
    %v497 = vpack.c.b16 %v413, %v412
    %v498 = vpack.c.b16 %v415, %v414
    %v499 = vpack.c.b16 %v417, %v416
    %v500 = vpack.c.b16 %v419, %v418
    %v501 = vpack.c.b16 %v421, %v420
    %v502 = vpack.c.b16 %v423, %v422
    %v503 = vpack.c.b16 %v425, %v424
    %v504 = vpack.c.b16 %v427, %v426
    %v505 = vpack.c.b16 %v429, %v428
    %v506 = vpack.c.b16 %v431, %v430
    %v507 = vpack.c.b16 %v433, %v432
    %v508 = vpack.c.b16 %v435, %v434
    %v509 = vpack.c.b16 %v437, %v436
    %v510 = vpack.c.b16 %v439, %v438
    %v511 = vpack.c.b16 %v441, %v440
    %v512 = vpack.c.b16 %v443, %v442
    %v513 = vpack.c.b16 %v445, %v444
    %v514 = vpack.c.b16 %v447, %v446
    %v515 = vpack.c.b16 %v449, %v448
    %v516 = vpack.c.b16 %v451, %v450
    %v517 = vpack.c.b16 %v453, %v452
    %582 = vmatpush.bf16.msra.mxu0 %v461
    %583 = vmatpush.bf16.msra.mxu0 %v460
    %584 = vmatpush.bf16.msra.mxu0 %v459
    %585 = vmatpush.bf16.msra.mxu0 %v458
    %586 = vmatpush.bf16.msra.mxu0 %v457
    %587 = vmatpush.bf16.msra.mxu0 %v456
    %588 = vmatpush.bf16.msra.mxu0 %v455
    %589 = vmatpush.bf16.msra.mxu0 %v454
    %590 = vmatmul.bf16.gmra.mxu0 %v61
    %v591 = vpop.f32.mrf.mxu0
    %v592 = vadd.f32 0.0, %v591
    %v593 = vpop.f32.mrf.mxu0
    %594 = vdwg.mxu0
    %595 = vmatpush.bf16.msra.mxu0 %v469
    %596 = vmatpush.bf16.msra.mxu0 %v468
    %597 = vmatpush.bf16.msra.mxu0 %v467
    %598 = vmatpush.bf16.msra.mxu0 %v466
    %599 = vmatpush.bf16.msra.mxu0 %v465
    %600 = vmatpush.bf16.msra.mxu0 %v464
    %601 = vmatpush.bf16.msra.mxu0 %v463
    %602 = vmatpush.bf16.msra.mxu0 %v462
    %603 = vmatmul.bf16.gmra.mxu0 %v62
    %v604 = vpop.f32.mrf.mxu0
    %v605 = vadd.f32 %v592, %v604
    %v606 = vpop.f32.mrf.mxu0
    %607 = vdwg.mxu0
    %608 = vmatpush.bf16.msra.mxu0 %v477
    %609 = vmatpush.bf16.msra.mxu0 %v476
    %610 = vmatpush.bf16.msra.mxu0 %v475
    %611 = vmatpush.bf16.msra.mxu0 %v474
    %612 = vmatpush.bf16.msra.mxu0 %v473
    %613 = vmatpush.bf16.msra.mxu0 %v472
    %614 = vmatpush.bf16.msra.mxu0 %v471
    %615 = vmatpush.bf16.msra.mxu0 %v470
    %616 = vmatmul.bf16.gmra.mxu0 %v63
    %v617 = vpop.f32.mrf.mxu0
    %v618 = vadd.f32 %v605, %v617
    %v619 = vpop.f32.mrf.mxu0
    %620 = vdwg.mxu0
    %621 = vmatpush.bf16.msra.mxu0 %v485
    %622 = vmatpush.bf16.msra.mxu0 %v484
    %623 = vmatpush.bf16.msra.mxu0 %v483
    %624 = vmatpush.bf16.msra.mxu0 %v482
    %625 = vmatpush.bf16.msra.mxu0 %v481
    %626 = vmatpush.bf16.msra.mxu0 %v480
    %627 = vmatpush.bf16.msra.mxu0 %v479
    %628 = vmatpush.bf16.msra.mxu0 %v478
    %629 = vmatmul.bf16.gmra.mxu0 %v64
    %v630 = vpop.f32.mrf.mxu0
    %v631 = vadd.f32 %v618, %v630
    %v632 = vpop.f32.mrf.mxu0
    %633 = vdwg.mxu0
    %634 = vmatpush.bf16.msra.mxu0 %v493
    %635 = vmatpush.bf16.msra.mxu0 %v492
    %636 = vmatpush.bf16.msra.mxu0 %v491
    %637 = vmatpush.bf16.msra.mxu0 %v490
    %638 = vmatpush.bf16.msra.mxu0 %v489
    %639 = vmatpush.bf16.msra.mxu0 %v488
    %640 = vmatpush.bf16.msra.mxu0 %v487
    %641 = vmatpush.bf16.msra.mxu0 %v486
    %642 = vmatmul.bf16.gmra.mxu0 %v65
    %v643 = vpop.f32.mrf.mxu0
    %v644 = vadd.f32 %v631, %v643
    %v645 = vpop.f32.mrf.mxu0
    %646 = vdwg.mxu0
    %647 = vmatpush.bf16.msra.mxu0 %v501
    %648 = vmatpush.bf16.msra.mxu0 %v500
    %649 = vmatpush.bf16.msra.mxu0 %v499
    %650 = vmatpush.bf16.msra.mxu0 %v498
    %651 = vmatpush.bf16.msra.mxu0 %v497
    %652 = vmatpush.bf16.msra.mxu0 %v496
    %653 = vmatpush.bf16.msra.mxu0 %v495
    %654 = vmatpush.bf16.msra.mxu0 %v494
    %655 = vmatmul.bf16.gmra.mxu0 %v66
    %v656 = vpop.f32.mrf.mxu0
    %v657 = vadd.f32 %v644, %v656
    %v658 = vpop.f32.mrf.mxu0
    %659 = vdwg.mxu0
    %660 = vmatpush.bf16.msra.mxu0 %v509
    %661 = vmatpush.bf16.msra.mxu0 %v508
    %662 = vmatpush.bf16.msra.mxu0 %v507
    %663 = vmatpush.bf16.msra.mxu0 %v506
    %664 = vmatpush.bf16.msra.mxu0 %v505
    %665 = vmatpush.bf16.msra.mxu0 %v504
    %666 = vmatpush.bf16.msra.mxu0 %v503
    %667 = vmatpush.bf16.msra.mxu0 %v502
    %668 = vmatmul.bf16.gmra.mxu0 %v67
    %v669 = vpop.f32.mrf.mxu0
    %v670 = vadd.f32 %v657, %v669
    %v671 = vpop.f32.mrf.mxu0
    %672 = vdwg.mxu0
    %673 = vmatpush.bf16.msra.mxu0 %v517
    %674 = vmatpush.bf16.msra.mxu0 %v516
    %675 = vmatpush.bf16.msra.mxu0 %v515
    %676 = vmatpush.bf16.msra.mxu0 %v514
    %677 = vmatpush.bf16.msra.mxu0 %v513
    %678 = vmatpush.bf16.msra.mxu0 %v512
    %679 = vmatpush.bf16.msra.mxu0 %v511
    %680 = vmatpush.bf16.msra.mxu0 %v510
    %681 = vmatmul.bf16.gmra.mxu0 %v68
    %v682 = vpop.f32.mrf.mxu0
    %v683 = vadd.f32 %v670, %v682
    %v684 = vpop.f32.mrf.mxu0
    %685 = vdwg.mxu0
    %v686 = vadd.f32 %v197, %v683
    %687 = vst [vmem:[#allocation2] sm:$0xff] %v686
    // Predicated region
    $region30: #{tpu_custom_call.1} parent=1 // pred_check
      %p688 = pneg %p48
    $region31: #{tpu_custom_call.1} parent=1 // pred_check_branch
      %690 = sbr.rel (%p688) target = $region33
    $region32: #{tpu_custom_call.1} parent=1 // pred_region
      %v691 = vld [vmem:[#allocation2] sm:$0xff]
      %v692 = vld [vmem:[%s2] sm:$0x1]
      %v694 = vperm.slane %v692, 0
      %v696 = vadd.f32 %v691, %v694
      %697 = vmax.xlane.f32.xlu0 %v696
      %v698 = vpop.xlane.xlu0 %697
      %v699 = vsub.f32 %v696, %v698
      %v700 = vmul.f32 %v699, 1.442695
      %v701 = vpow.pop %v700
      %702 = vadd.xlane.f32.xlu0 %v701
      %v703 = vpop.xlane.xlu0 %702
      %v704 = vlog2.pop %v703
      %v705 = vmul.f32 %v704, 0.6931472
      %v706 = vadd.f32 %v698, %v705
      %v707 = vlaneseq
      %v708 = vand.u32 %v707, 127
      %v709 = vld [vmem:[%s3] sm:$0xff]
      %710 = vset.pattern.permute.xlu0 0
      %711 = vperm.xlu0 %710, %v709
      %v712 = vpop.permute.xlu0 %711
      %vm713 = vcmp.eq.s32.totalorder %v708, %v712
      %v714 = vsel %vm713, 1, 0
      %v715 = vcvt.s32.f32 %v714
      %v716 = vmul.f32 %v696, %v715
      %717 = vadd.xlane.f32.xlu0 %v716
      %v718 = vpop.xlane.xlu0 %717
      %v719 = vsub.f32 %v706, %v718
      %720 = vst [vmem:[#allocation8] sm:$0xff] %v719
    $region33: #{tpu_custom_call.1} parent=1 // pred_fallthru
      _
    // Predicated region
    $region34: #{tpu_custom_call.1} parent=1 // pred_check
      _
    $region35: #{tpu_custom_call.1} parent=1 // pred_check_branch
      %722 = sbr.rel (0) target = $region37
    $region36: #{tpu_custom_call.1} parent=1 // pred_region
      %724 = vsyncadd [#allocation5], 0
      %s726 = sshll.u32 [#allocation8], 4
      %s727 = int_to_ptr.vmem [resolvable:$true] %s726
      %s728 = sshll.u32 %s4, 4
      %s729 = int_to_ptr.hbm [resolvable:$true] %s728
      %731 = dma.vmem_to_hbm [thread:$0]  %s727, 128, %s729, [#allocation5]
    $region37: #{tpu_custom_call.1} parent=1 // pred_fallthru
      _
    // Predicated region
    $region38: #{tpu_custom_call.1} parent=1 // pred_check
      _
    $region39: #{tpu_custom_call.1} parent=1 // pred_check_branch
      %733 = sbr.rel (0) target = $region41
    $region40: #{tpu_custom_call.1} parent=1 // pred_region
      %735 = dma.done [#allocation5], 128
    $region41: #{tpu_custom_call.1} parent=1 // pred_fallthru
      _
    %736 = vsyncpa [#allocation4], 1
    %737 = vsyncpa [#allocation7], 1
    %738 = vsyncpa [#allocation5], 1

</llo_original>
